<compile_context>
chip_gen: v7x
topology: tpu7x:2x2x1
jax: 0.10.0
libtpu: 0.0.40
codegen_flags: <defaults>
</compile_context>

<pallas_src>
import jax
import jax.numpy as jnp
from jax.experimental import pallas as pl
from jax.experimental.pallas import tpu as pltpu


_LANE_CANDIDATES = (1024, 512, 256, 128)   # multiples of 128 -> unmasked vst
_MIN_PALLAS_BYTES = 4 << 20                # below this, XLA convert wins


def _frft_cast_kernel(x_ref, o_ref):
    # FrFT2D: cast to complex64 and take the real part -> float32 identity.
    o_ref[...] = x_ref[...].astype(jnp.float32)


def _tile_rows_for_device():
    """Pick the row-tile size from the device generation's scoped-VMEM budget."""
    try:
        kind = jax.devices()[0].device_kind.lower()
    except Exception:  # pragma: no cover - defensive; default is safe anywhere
        kind = ""
    # v6e / v7x: 32 MiB default scoped VMEM -> 1024-row tiles (<=16 MiB working
    # set, double-buffered) halve grid-step overhead at no cost.
    if "v6" in kind or "v7" in kind:
        return 1024
    # v5e (and unknown): 16 MiB default scoped VMEM -> stay at 512 rows.
    return 512


def _pallas_identity_cast(x):
    """Lane-dense, large-tile Pallas cast of x to float32 (no pad, no slice)."""
    n = x.size

    lanes = None
    for cand in _LANE_CANDIDATES:
        if n % cand == 0:
            lanes = cand
            break
    if lanes is None:
        # No padding-free lane-dense factorization; a pad+slice wrapper would
        # triple HBM traffic, so let XLA's (roofline) convert handle it.
        return x.astype(jnp.float32)

    rows = n // lanes
    tile_rows = min(_tile_rows_for_device(), rows)
    grid = pl.cdiv(rows, tile_rows)  # ragged last block handled by Pallas masks

    x2d = x.reshape(rows, lanes)     # no jnp.pad: lanes divides n exactly

    itemsize = jnp.dtype(x.dtype).itemsize
    cost = pl.CostEstimate(
        flops=0,
        transcendentals=0,
        bytes_accessed=n * itemsize + n * 4,
    )

    # TODO(synk): on v7x, dimension_semantics=(pltpu.CORE_PARALLEL,) would shard
    # the row-tile axis across the 2 TensorCores; kept at "parallel" here since
    # it cannot be validated on v5e/v6e.
    out2d = pl.pallas_call(
        _frft_cast_kernel,
        out_shape=jax.ShapeDtypeStruct((rows, lanes), jnp.float32),
        grid_spec=pl.GridSpec(
            grid=(grid,),
            in_specs=[pl.BlockSpec((tile_rows, lanes), lambda i: (i, 0))],
            out_specs=pl.BlockSpec((tile_rows, lanes), lambda i: (i, 0)),
        ),
        compiler_params=pltpu.CompilerParams(
            dimension_semantics=("parallel",),
        ),
        cost_estimate=cost,
    )(x2d)

    return out2d.reshape(x.shape)


def frft2dhsi_forward(x, angles, channels, *, force_kernel=False):
    """Pallas implementation of FrFT2DHSI.forward.

    Args:
      x: array of shape (b, c, h, w), NCHW layout.
      angles: unused by the reference forward (kept for signature parity).
      channels: expected channel count (asserted, as in the nn.Module).
      force_kernel: if True, always run the Pallas cast kernel even when the
        input is already float32 or tiny (used to exercise the kernel path).

    Returns:
      float32 array of shape (b, c, h, w) equal to x (real part of complex cast).
    """
    b, c, h, w = x.shape
    assert c == channels, f"expected {channels} channels, got {c}"
    del angles  # unused by the reference forward

    if not force_kernel:
        if x.dtype == jnp.float32:
            # Exact identity for float32 inputs: zero HBM traffic beats any
            # kernel launch.
            return x
        if x.size * 4 < _MIN_PALLAS_BYTES:
            # Tiny tensor: custom-call + per-step overhead dominate; XLA's
            # convert fusion is already at roofline.
            return x.astype(jnp.float32)
    return _pallas_identity_cast(x)


if __name__ == "__main__":
    key = jax.random.PRNGKey(0)
    b, c, h, w = 2, 4, 16, 16          # small shapes; channels=4 for FrFT2DHSI(channels=4)
    k1, k2 = jax.random.split(key)
    x = jax.random.normal(k1, (b, c, h, w), dtype=jnp.float32)
    angles = jax.random.uniform(k2, (2,), dtype=jnp.float32)  # unused by forward
    ref = x.astype(jnp.float32)

    # 1) Exercise the Pallas kernel path explicitly.
    y = frft2dhsi_forward(x, angles, channels=c, force_kernel=True)
    y = jax.block_until_ready(y)
    assert y.shape == (b, c, h, w)
    assert y.dtype == jnp.float32
    assert jnp.allclose(y, ref), "kernel path mismatch vs reference identity"

    # 2) Default path for f32 input: exact short-circuit, same values.
    y_sc = jax.block_until_ready(frft2dhsi_forward(x, angles, channels=c))
    assert jnp.allclose(y_sc, ref), "short-circuit path mismatch"

    # 3) A genuine dtype cast (bf16 -> f32) — Pallas kernel path, forced since
    #    the test tensor is below the small-input dispatch threshold.
    x_bf16 = x.astype(jnp.bfloat16)
    y_bf = jax.block_until_ready(
        frft2dhsi_forward(x_bf16, angles, channels=c, force_kernel=True))
    assert y_bf.dtype == jnp.float32
    assert jnp.allclose(y_bf, x_bf16.astype(jnp.float32)), "cast path mismatch"

    # 4) Default (dispatch) path for bf16 input also matches.
    y_bf2 = jax.block_until_ready(frft2dhsi_forward(x_bf16, angles, channels=c))
    assert jnp.allclose(y_bf2, x_bf16.astype(jnp.float32)), "dispatch path mismatch"

    print("KERNEL_OK")
</pallas_src>

<mosaic_0001>
module attributes {stable_mosaic.version = 11 : i64} {
  func.func @_frft_cast_kernel(%arg0: i32, %arg1: memref<2x1024xf32, #tpu.memory_space<vmem>>, %arg2: memref<2x1024xf32, #tpu.memory_space<vmem>>) attributes {dimension_semantics = [#tpu.dimension_semantics<parallel>], iteration_bounds = array<i64: 1>, scalar_prefetch = 0 : i64, scratch_operands = 0 : i64, tpu.core_type = #tpu.core_type<tc>, window_params = [{transform_indices = @transform_0, window_bounds = array<i64: 2, 1024>}, {transform_indices = @transform_1, window_bounds = array<i64: 2, 1024>}]} {
    %c0 = arith.constant 0 : index
    %c0_0 = arith.constant 0 : index
    %0 = vector.load %arg1[%c0, %c0_0] : memref<2x1024xf32, #tpu.memory_space<vmem>>, vector<2x1024xf32>
    %c0_1 = arith.constant 0 : index
    %c0_2 = arith.constant 0 : index
    %1 = vector.load %arg2[%c0_1, %c0_2] : memref<2x1024xf32, #tpu.memory_space<vmem>>, vector<2x1024xf32>
    tpu.vector_store %arg2[%c0_1, %c0_2], %0 {strides = array<i32>} : memref<2x1024xf32, #tpu.memory_space<vmem>>, vector<2x1024xf32>,
    return
  }
  func.func @transform_0(%arg0: i32) -> (i32, i32) {
    %c0_i32 = arith.constant 0 : i32
    %c0_i32_0 = arith.constant 0 : i32
    return %arg0, %c0_i32 : i32, i32
  }
  func.func @transform_1(%arg0: i32) -> (i32, i32) {
    %c0_i32 = arith.constant 0 : i32
    %c0_i32_0 = arith.constant 0 : i32
    return %arg0, %c0_i32 : i32, i32
  }
}

</mosaic_0001>

<llo_original>
// kernel: tpu_custom_call.1
$region0: #{tpu_custom_call.1}
  #allocation0 [shape = 'u32[]', space=smem, size = 0x4, offset = 0x4, fixed_abs, tag = 'smem constant byte address 0x4 - core index']
  #allocation1 [shape = 'u32[144,128]{1,0:T(1,128)}', space=vmem, size = 0x12000, scoped, tag = 'internal scratch']
  %s0 = inlined_call_operand.hbm [shape: f32[2,1024], index: 0, kind: input, shape index: {}]
  %s1 = inlined_call_operand.hbm [shape: f32[2,1024], index: 1, kind: output, shape index: {}]
  %s2 = sld [smem:[#allocation0]]
  $region18: #{tpu_custom_call.1} parent=0
    _
  %s4 = ssub.s32 1, %s2
  %s5 = scalar_select 0, %s4, %s2
  $region1: #{tpu_custom_call.1} parent=0
    #allocation2 [shape = 'u8[8192]{0}', space=vmem, size = 0x2000, scoped, tag = 'input window, operand 0, single buffered']
    #allocation3 [shape = 's32[1]{0}', space=sflag, size = 0x4, scoped, tag = 'scoped memory for tpu_custom_call.1']
    #allocation4 [shape = 's32[1]{0}', space=sflag, size = 0x4, scoped, tag = 'scoped memory for tpu_custom_call.1']
    #allocation5 [shape = 'u8[8192]{0}', space=vmem, size = 0x2000, scoped, tag = 'output window, operand 0, single buffered']
    %6 = vsyncpa [#allocation3], 0
    %7 = vsyncpa [#allocation4], 0
    // Predicated region
    $region2: #{tpu_custom_call.1} parent=1 // pred_check
      _
    $region3: #{tpu_custom_call.1} parent=1 // pred_check_branch
      %9 = sbr.rel (0) target = $region5
    $region4: #{tpu_custom_call.1} parent=1 // pred_region
      %s11 = ssub.s32 256, 256
      %12 = vsyncadd [#allocation3], %s11
      %s14 = sshll.u32 [#allocation2], 4
      %s15 = int_to_ptr.vmem [resolvable:$true] %s14
      %17 = dma.hbm_to_vmem [thread:$0]  %s0, 256, %s15, [#allocation3]
    $region5: #{tpu_custom_call.1} parent=1 // pred_fallthru
      _
    // Predicated region
    $region6: #{tpu_custom_call.1} parent=1 // pred_check
      _
    $region7: #{tpu_custom_call.1} parent=1 // pred_check_branch
      %19 = sbr.rel (0) target = $region9
    $region8: #{tpu_custom_call.1} parent=1 // pred_region
      %20 = dma.done [#allocation3], 256
    $region9: #{tpu_custom_call.1} parent=1 // pred_fallthru
      _
    %v21 = vld [vmem:[#allocation2] sm:$0xff]
    %v22 = vld [vmem:[#allocation2 + $0x8] sm:$0xff]
    %23 = vst [vmem:[#allocation5] sm:$0xff] %v21
    %24 = vst [vmem:[#allocation5 + $0x8] sm:$0xff] %v22
    // Predicated region
    $region10: #{tpu_custom_call.1} parent=1 // pred_check
      _
    $region11: #{tpu_custom_call.1} parent=1 // pred_check_branch
      %26 = sbr.rel (0) target = $region13
    $region12: #{tpu_custom_call.1} parent=1 // pred_region
      %s28 = ssub.s32 256, 256
      %29 = vsyncadd [#allocation4], %s28
      %s31 = sshll.u32 [#allocation5], 4
      %s32 = int_to_ptr.vmem [resolvable:$true] %s31
      %34 = dma.vmem_to_hbm [thread:$0]  %s32, 256, %s1, [#allocation4]
    $region13: #{tpu_custom_call.1} parent=1 // pred_fallthru
      _
    // Predicated region
    $region14: #{tpu_custom_call.1} parent=1 // pred_check
      _
    $region15: #{tpu_custom_call.1} parent=1 // pred_check_branch
      %36 = sbr.rel (0) target = $region17
    $region16: #{tpu_custom_call.1} parent=1 // pred_region
      %37 = dma.done [#allocation4], 256
    $region17: #{tpu_custom_call.1} parent=1 // pred_fallthru
      _
    %38 = vsyncpa [#allocation3], 1
    %39 = vsyncpa [#allocation4], 1

</llo_original>
